<compile_context>
chip_gen: v7x
topology: tpu7x:2x2x1
jax: 0.10.0
libtpu: 0.0.40
codegen_flags: <defaults>
</compile_context>

<pallas_src>
import functools

import jax
import jax.numpy as jnp
from jax.experimental import pallas as pl
from jax.experimental.pallas import tpu as pltpu


def _round_up(x, m):
    return ((x + m - 1) // m) * m


def _cdiv(a, b):
    return (a + b - 1) // b


# ---------------------------------------------------------------------------
# Kernel body
# ---------------------------------------------------------------------------
def _bifcn_kernel(n_hidden_layers, compute_dtype,
                  x_ref,
                  w_in_ref, b_in_ref,
                  wh_ref, bh_ref,
                  w_out_ref, b_out_ref,
                  out_ref):
    def act(pre_f32):
        # tanh in compute dtype (bf16 on v6e/v7x when enabled, else f32).
        return jnp.tanh(pre_f32.astype(compute_dtype))

    x = x_ref[...]

    # Fused + lane-packed first layer.
    h = act(jnp.dot(x, w_in_ref[...], preferred_element_type=jnp.float32)
            + b_in_ref[...])

    # Fused + lane-packed hidden layers (block-diagonal weights keep the two
    # branches and the P packed batch rows independent).
    for i in range(n_hidden_layers):
        h = act(jnp.dot(h, wh_ref[i], preferred_element_type=jnp.float32)
                + bh_ref[i])

    # Fused final layer: (tile_rows, P*2) = P x [o1, o2] per packed row.
    out = (jnp.dot(h, w_out_ref[...], preferred_element_type=jnp.float32)
           + b_out_ref[...])
    out_ref[...] = out.astype(out_ref.dtype)


# ---------------------------------------------------------------------------
# Parameter packing (done once, outside the per-call path)
# ---------------------------------------------------------------------------
def _block_diag(blocks):
    rows = sum(b.shape[0] for b in blocks)
    cols = sum(b.shape[1] for b in blocks)
    out = jnp.zeros((rows, cols), blocks[0].dtype)
    r = c = 0
    for b in blocks:
        out = out.at[r:r + b.shape[0], c:c + b.shape[1]].set(b)
        r += b.shape[0]
        c += b.shape[1]
    return out


def _pack_params(params, n_input, n_hidden, n_hidden_layers, pack):
    """Fuse the two branches block-diagonally, then lane-pack `pack` copies."""
    assert n_input >= 2, "BiFCN parameter net reads x[:, :2]; need N_INPUT >= 2"
    H = n_hidden
    f32 = jnp.float32

    w0, b0 = params["w0"].astype(f32), params["b0"].astype(f32)
    wh, bh = params["wh"].astype(f32), params["bh"].astype(f32)
    we, be = params["we"].astype(f32), params["be"].astype(f32)
    w02, b02 = params["w02"].astype(f32), params["b02"].astype(f32)
    wh2, bh2 = params["wh2"].astype(f32), params["bh2"].astype(f32)
    we2, be2 = params["we2"].astype(f32), params["be2"].astype(f32)

    # --- fuse the two branches (exact: off-block zeros add exact zeros) ---
    # First layer: branch 2 only sees x[:, :2]; zero-pad its weight rows.
    w02_pad = jnp.zeros((n_input, H), f32).at[:2, :].set(w02)
    w_in_f = jnp.concatenate([w0, w02_pad], axis=1)            # (D1, 2H)
    b_in_f = jnp.concatenate([b0, b02], axis=1)                # (1, 2H)
    w_hid_f = [_block_diag([wh[i], wh2[i]])                    # (2H, 2H) each
               for i in range(n_hidden_layers)]
    b_hid_f = jnp.concatenate([bh, bh2], axis=2)               # (nh, 1, 2H)
    w_out_f = _block_diag([we, we2])                           # (2H, 2)
    b_out_f = jnp.concatenate([be, be2], axis=1)               # (1, 2)

    # --- lane-pack `pack` batch rows per 128-lane span ---
    w_in = _block_diag([w_in_f] * pack)                        # (P*D1, P*2H)
    b_in = jnp.tile(b_in_f, (1, pack))                         # (1, P*2H)
    w_hid = jnp.stack([_block_diag([w] * pack) for w in w_hid_f])  # (nh,P2H,P2H)
    b_hid = jnp.tile(b_hid_f, (1, 1, pack))                    # (nh, 1, P*2H)
    w_out = _block_diag([w_out_f] * pack)                      # (P*2H, P*2)
    b_out = jnp.tile(b_out_f, (1, pack))                       # (1, P*2)

    return w_in, b_in, w_hid, b_hid, w_out, b_out


# ---------------------------------------------------------------------------
# Forward factory
# ---------------------------------------------------------------------------
def make_bifcn_forward(params, n_input, n_hidden, n_layers, *,
                       tile_b=4096, use_bf16=False):
    """Pack parameters once and return a jitted forward(x: (B, D1)) -> (B, 2)."""
    n_hidden_layers = n_layers - 1
    assert n_hidden_layers >= 1, "N_LAYERS must be >= 2"

    # Number of batch rows packed into one 128-lane span (2H lanes per row).
    pack = max(1, 128 // (2 * n_hidden))
    compute_dtype = jnp.bfloat16 if use_bf16 else jnp.float32

    packed = _pack_params(params, n_input, n_hidden, n_hidden_layers, pack)
    if use_bf16:
        # Weights to bf16 for the MXU / bf16 tanh; biases stay f32 (f32 accum).
        w_in, b_in, w_h, b_h, w_o, b_o = packed
        packed = (w_in.astype(compute_dtype), b_in,
                  w_h.astype(compute_dtype), b_h,
                  w_o.astype(compute_dtype), b_o)

    kernel = functools.partial(_bifcn_kernel, n_hidden_layers, compute_dtype)

    def _forward(x):
        B, D1 = x.shape
        assert D1 == n_input

        rows_needed = _cdiv(B, pack)                 # packed rows
        tile_rows = _round_up(max(tile_b // pack, 8), 8)
        if rows_needed > 8:
            # >= 2 'parallel' grid steps so both v7x TensorCores get work.
            tile_rows = min(tile_rows, _round_up(_cdiv(rows_needed, 2), 8))
        tile_rows = max(8, min(tile_rows, _round_up(rows_needed, 8)))
        rows_pad = _round_up(rows_needed, tile_rows)
        b_pad = rows_pad * pack

        x_p = x.astype(compute_dtype)
        if b_pad != B:
            x_p = jnp.pad(x_p, ((0, b_pad - B), (0, 0)))
        # Row-major reshape packs `pack` consecutive batch rows per packed row.
        x_p = x_p.reshape(rows_pad, pack * D1)

        def full_spec(arr):
            nd = arr.ndim
            return pl.BlockSpec(arr.shape, lambda i, _nd=nd: (0,) * _nd)

        in_specs = [pl.BlockSpec((tile_rows, pack * D1), lambda i: (i, 0))]
        in_specs += [full_spec(p) for p in packed]

        out = pl.pallas_call(
            kernel,
            out_shape=jax.ShapeDtypeStruct((rows_pad, pack * 2), jnp.float32),
            grid_spec=pltpu.PrefetchScalarGridSpec(
                num_scalar_prefetch=0,
                grid=(rows_pad // tile_rows,),
                in_specs=in_specs,
                out_specs=pl.BlockSpec((tile_rows, pack * 2), lambda i: (i, 0)),
            ),
            compiler_params=pltpu.CompilerParams(
                dimension_semantics=("parallel",)),
        )(x_p, *packed)

        # (rows_pad, P*2) -> (b_pad, 2): each packed row holds P x [o1, o2].
        return out.reshape(b_pad, 2)[:B]

    return jax.jit(_forward)


# ---------------------------------------------------------------------------
# Reference + synthetic init
# ---------------------------------------------------------------------------
def init_params(key, n_input, n_hidden, n_layers):
    """Deterministic synthetic init (uniform, PyTorch-Linear-like scaling)."""
    nh = n_layers - 1
    ks = jax.random.split(key, 12)

    def lin(k, fan_in, shape):
        bound = 1.0 / jnp.sqrt(jnp.float32(fan_in))
        return jax.random.uniform(k, shape, jnp.float32, -bound, bound)

    return {
        # branch 1 (solution net)
        "w0":  lin(ks[0], n_input, (n_input, n_hidden)),
        "b0":  lin(ks[1], n_input, (1, n_hidden)),
        "wh":  lin(ks[2], n_hidden, (nh, n_hidden, n_hidden)),
        "bh":  lin(ks[3], n_hidden, (nh, 1, n_hidden)),
        "we":  lin(ks[4], n_hidden, (n_hidden, 1)),
        "be":  lin(ks[5], n_hidden, (1, 1)),
        # branch 2 (parameter net, input dim = 2)
        "w02": lin(ks[6], 2, (2, n_hidden)),
        "b02": lin(ks[7], 2, (1, n_hidden)),
        "wh2": lin(ks[8], n_hidden, (nh, n_hidden, n_hidden)),
        "bh2": lin(ks[9], n_hidden, (nh, 1, n_hidden)),
        "we2": lin(ks[10], n_hidden, (n_hidden, 1)),
        "be2": lin(ks[11], n_hidden, (1, 1)),
    }


def bifcn_reference(x, params, n_layers):
    """Pure-JAX reference mirroring the PyTorch forward."""
    nh = n_layers - 1
    h1 = jnp.tanh(x @ params["w0"] + params["b0"])
    for i in range(nh):
        h1 = jnp.tanh(h1 @ params["wh"][i] + params["bh"][i])
    o1 = h1 @ params["we"] + params["be"]

    h2 = jnp.tanh(x[:, :2] @ params["w02"] + params["b02"])
    for i in range(nh):
        h2 = jnp.tanh(h2 @ params["wh2"][i] + params["bh2"][i])
    o2 = h2 @ params["we2"] + params["be2"]
    return jnp.concatenate([o1, o2], axis=-1)


if __name__ == "__main__":
    N_INPUT, N_OUTPUT, N_HIDDEN, N_LAYERS = 3, 2, 32, 3
    B = 16

    key = jax.random.PRNGKey(0)
    kx, kp = jax.random.split(key)
    x = jax.random.normal(kx, (B, N_INPUT), jnp.float32)
    params = init_params(kp, N_INPUT, N_HIDDEN, N_LAYERS)

    # Pack weights once (hoisted), get a jitted forward.
    forward = make_bifcn_forward(params, N_INPUT, N_HIDDEN, N_LAYERS,
                                 tile_b=4096, use_bf16=False)

    out = jax.block_until_ready(forward(x))

    ref = bifcn_reference(x, params, N_LAYERS)
    assert out.shape == (B, N_OUTPUT)
    assert jnp.allclose(out, ref, atol=1e-5, rtol=1e-5)

    print("KERNEL_OK")
</pallas_src>

<mosaic_0001>
module attributes {stable_mosaic.version = 11 : i64} {
  func.func @_bifcn_kernel(%arg0: i32, %arg1: memref<8x6xf32, #tpu.memory_space<vmem>>, %arg2: memref<6x128xf32, #tpu.memory_space<vmem>>, %arg3: memref<1x128xf32, #tpu.memory_space<vmem>>, %arg4: memref<2x128x128xf32, #tpu.memory_space<vmem>>, %arg5: memref<2x1x128xf32, #tpu.memory_space<vmem>>, %arg6: memref<128x4xf32, #tpu.memory_space<vmem>>, %arg7: memref<1x4xf32, #tpu.memory_space<vmem>>, %arg8: memref<8x4xf32, #tpu.memory_space<vmem>>) attributes {dimension_semantics = [#tpu.dimension_semantics<parallel>], iteration_bounds = array<i64: 1>, scalar_prefetch = 0 : i64, scratch_operands = 0 : i64, tpu.core_type = #tpu.core_type<tc>, window_params = [{transform_indices = @transform_0, window_bounds = array<i64: 8, 6>}, {pipeline_mode = #tpu.pipeline_mode<synchronous>, transform_indices = @transform_1, window_bounds = array<i64: 6, 128>}, {pipeline_mode = #tpu.pipeline_mode<synchronous>, transform_indices = @transform_2, window_bounds = array<i64: 1, 128>}, {pipeline_mode = #tpu.pipeline_mode<synchronous>, transform_indices = @transform_3, window_bounds = array<i64: 2, 128, 128>}, {pipeline_mode = #tpu.pipeline_mode<synchronous>, transform_indices = @transform_4, window_bounds = array<i64: 2, 1, 128>}, {pipeline_mode = #tpu.pipeline_mode<synchronous>, transform_indices = @transform_5, window_bounds = array<i64: 128, 4>}, {pipeline_mode = #tpu.pipeline_mode<synchronous>, transform_indices = @transform_6, window_bounds = array<i64: 1, 4>}, {transform_indices = @transform_7, window_bounds = array<i64: 8, 4>}]} {
    %c0 = arith.constant 0 : index
    %c0_0 = arith.constant 0 : index
    %0 = vector.load %arg1[%c0, %c0_0] : memref<8x6xf32, #tpu.memory_space<vmem>>, vector<8x6xf32>
    %c0_1 = arith.constant 0 : index
    %c0_2 = arith.constant 0 : index
    %1 = vector.load %arg2[%c0_1, %c0_2] : memref<6x128xf32, #tpu.memory_space<vmem>>, vector<6x128xf32>
    %cst = arith.constant dense<0.000000e+00> : vector<8x128xf32>
    %2 = tpu.matmul %0, %1, %cst {dimension_numbers = #tpu.dot_dimension_numbers<[1], [0], [0], [1], [0, 0, 1, 1], [], []>} : vector<8x6xf32>, vector<6x128xf32>, vector<8x128xf32> -> vector<8x128xf32>
    %c0_3 = arith.constant 0 : index
    %c0_4 = arith.constant 0 : index
    %3 = vector.load %arg3[%c0_3, %c0_4] : memref<1x128xf32, #tpu.memory_space<vmem>>, vector<1x128xf32>
    %4 = vector.broadcast %3 : vector<1x128xf32> to vector<8x128xf32>
    %5 = arith.addf %2, %4 : vector<8x128xf32>
    %6 = math.tanh %5 : vector<8x128xf32>
    %c0_5 = arith.constant 0 : index
    %c0_6 = arith.constant 0 : index
    %c0_7 = arith.constant 0 : index
    %7 = vector.load %arg4[%c0_5, %c0_6, %c0_7] : memref<2x128x128xf32, #tpu.memory_space<vmem>>, vector<1x128x128xf32>
    %8 = vector.shape_cast %7 : vector<1x128x128xf32> to vector<128x128xf32>
    %cst_8 = arith.constant dense<0.000000e+00> : vector<8x128xf32>
    %9 = tpu.matmul %6, %8, %cst_8 {dimension_numbers = #tpu.dot_dimension_numbers<[1], [0], [0], [1], [0, 0, 1, 1], [], []>} : vector<8x128xf32>, vector<128x128xf32>, vector<8x128xf32> -> vector<8x128xf32>
    %c0_9 = arith.constant 0 : index
    %c0_10 = arith.constant 0 : index
    %c0_11 = arith.constant 0 : index
    %10 = vector.load %arg5[%c0_9, %c0_10, %c0_11] : memref<2x1x128xf32, #tpu.memory_space<vmem>>, vector<1x1x128xf32>
    %11 = vector.shape_cast %10 : vector<1x1x128xf32> to vector<1x128xf32>
    %12 = vector.broadcast %11 : vector<1x128xf32> to vector<8x128xf32>
    %13 = arith.addf %9, %12 : vector<8x128xf32>
    %14 = math.tanh %13 : vector<8x128xf32>
    %c1 = arith.constant 1 : index
    %c0_12 = arith.constant 0 : index
    %c0_13 = arith.constant 0 : index
    %15 = vector.load %arg4[%c1, %c0_12, %c0_13] : memref<2x128x128xf32, #tpu.memory_space<vmem>>, vector<1x128x128xf32>
    %16 = vector.shape_cast %15 : vector<1x128x128xf32> to vector<128x128xf32>
    %cst_14 = arith.constant dense<0.000000e+00> : vector<8x128xf32>
    %17 = tpu.matmul %14, %16, %cst_14 {dimension_numbers = #tpu.dot_dimension_numbers<[1], [0], [0], [1], [0, 0, 1, 1], [], []>} : vector<8x128xf32>, vector<128x128xf32>, vector<8x128xf32> -> vector<8x128xf32>
    %c1_15 = arith.constant 1 : index
    %c0_16 = arith.constant 0 : index
    %c0_17 = arith.constant 0 : index
    %18 = vector.load %arg5[%c1_15, %c0_16, %c0_17] : memref<2x1x128xf32, #tpu.memory_space<vmem>>, vector<1x1x128xf32>
    %19 = vector.shape_cast %18 : vector<1x1x128xf32> to vector<1x128xf32>
    %20 = vector.broadcast %19 : vector<1x128xf32> to vector<8x128xf32>
    %21 = arith.addf %17, %20 : vector<8x128xf32>
    %22 = math.tanh %21 : vector<8x128xf32>
    %c0_18 = arith.constant 0 : index
    %c0_19 = arith.constant 0 : index
    %23 = vector.load %arg6[%c0_18, %c0_19] : memref<128x4xf32, #tpu.memory_space<vmem>>, vector<128x4xf32>
    %cst_20 = arith.constant dense<0.000000e+00> : vector<8x4xf32>
    %24 = tpu.matmul %22, %23, %cst_20 {dimension_numbers = #tpu.dot_dimension_numbers<[1], [0], [0], [1], [0, 0, 1, 1], [], []>} : vector<8x128xf32>, vector<128x4xf32>, vector<8x4xf32> -> vector<8x4xf32>
    %c0_21 = arith.constant 0 : index
    %c0_22 = arith.constant 0 : index
    %25 = vector.load %arg7[%c0_21, %c0_22] : memref<1x4xf32, #tpu.memory_space<vmem>>, vector<1x4xf32>
    %26 = vector.broadcast %25 : vector<1x4xf32> to vector<8x4xf32>
    %27 = arith.addf %24, %26 : vector<8x4xf32>
    %c0_23 = arith.constant 0 : index
    %c0_24 = arith.constant 0 : index
    %28 = vector.load %arg8[%c0_23, %c0_24] : memref<8x4xf32, #tpu.memory_space<vmem>>, vector<8x4xf32>
    tpu.vector_store %arg8[%c0_23, %c0_24], %27 {strides = array<i32>} : memref<8x4xf32, #tpu.memory_space<vmem>>, vector<8x4xf32>,
    return
  }
  func.func @transform_0(%arg0: i32) -> (i32, i32) {
    %c0_i32 = arith.constant 0 : i32
    %c0_i32_0 = arith.constant 0 : i32
    return %arg0, %c0_i32 : i32, i32
  }
  func.func @transform_1(%arg0: i32) -> (i32, i32) {
    %c0_i32 = arith.constant 0 : i32
    %c0_i32_0 = arith.constant 0 : i32
    %c0_i32_1 = arith.constant 0 : i32
    return %c0_i32, %c0_i32_0 : i32, i32
  }
  func.func @transform_2(%arg0: i32) -> (i32, i32) {
    %c0_i32 = arith.constant 0 : i32
    %c0_i32_0 = arith.constant 0 : i32
    %c0_i32_1 = arith.constant 0 : i32
    return %c0_i32, %c0_i32_0 : i32, i32
  }
  func.func @transform_3(%arg0: i32) -> (i32, i32, i32) {
    %c0_i32 = arith.constant 0 : i32
    %c0_i32_0 = arith.constant 0 : i32
    %c0_i32_1 = arith.constant 0 : i32
    %c0_i32_2 = arith.constant 0 : i32
    return %c0_i32, %c0_i32_0, %c0_i32_1 : i32, i32, i32
  }
  func.func @transform_4(%arg0: i32) -> (i32, i32, i32) {
    %c0_i32 = arith.constant 0 : i32
    %c0_i32_0 = arith.constant 0 : i32
    %c0_i32_1 = arith.constant 0 : i32
    %c0_i32_2 = arith.constant 0 : i32
    return %c0_i32, %c0_i32_0, %c0_i32_1 : i32, i32, i32
  }
  func.func @transform_5(%arg0: i32) -> (i32, i32) {
    %c0_i32 = arith.constant 0 : i32
    %c0_i32_0 = arith.constant 0 : i32
    %c0_i32_1 = arith.constant 0 : i32
    return %c0_i32, %c0_i32_0 : i32, i32
  }
  func.func @transform_6(%arg0: i32) -> (i32, i32) {
    %c0_i32 = arith.constant 0 : i32
    %c0_i32_0 = arith.constant 0 : i32
    %c0_i32_1 = arith.constant 0 : i32
    return %c0_i32, %c0_i32_0 : i32, i32
  }
  func.func @transform_7(%arg0: i32) -> (i32, i32) {
    %c0_i32 = arith.constant 0 : i32
    %c0_i32_0 = arith.constant 0 : i32
    return %arg0, %c0_i32 : i32, i32
  }
}

</mosaic_0001>

<llo_original>
// kernel: _forward.1
$region0: #{_forward.1}
  #allocation0 [shape = 'u32[]', space=smem, size = 0x4, offset = 0x4, fixed_abs, tag = 'smem constant byte address 0x4 - core index']
  #allocation1 [shape = 'u32[144,128]{1,0:T(1,128)}', space=vmem, size = 0x12000, scoped, tag = 'internal scratch']
  %s0 = inlined_call_operand.vmem [shape: f32[8,6], index: 0, kind: input, shape index: {}]
  %s1 = inlined_call_operand.vmem [shape: f32[6,128], index: 1, kind: input, shape index: {}]
  %s2 = inlined_call_operand.vmem [shape: f32[1,128], index: 2, kind: input, shape index: {}]
  %s3 = inlined_call_operand.hbm [shape: f32[2,128,128], index: 3, kind: input, shape index: {}]
  %s4 = inlined_call_operand.vmem [shape: f32[2,1,128], index: 4, kind: input, shape index: {}]
  %s5 = inlined_call_operand.hbm [shape: f32[128,4], index: 5, kind: input, shape index: {}]
  %s6 = inlined_call_operand.vmem [shape: f32[1,4], index: 6, kind: input, shape index: {}]
  %s7 = inlined_call_operand.vmem [shape: f32[8,4], index: 7, kind: output, shape index: {}]
  %s8 = sld [smem:[#allocation0]]
  $region46: #{_forward.1} parent=0
    _
  %s10 = ssub.s32 1, %s8
  %s11 = scalar_select 0, %s10, %s8
  $region1: #{_forward.1} parent=0
    #allocation2 [shape = 'u8[131072]{0}', space=vmem, size = 0x20000, scoped, tag = 'input window, operand 3, single buffered']
    #allocation3 [shape = 's32[1]{0}', space=sflag, size = 0x4, scoped, tag = 'scoped memory for _forward.1']
    #allocation4 [shape = 'u8[65536]{0}', space=vmem, size = 0x10000, scoped, tag = 'input window, operand 5, single buffered']
    #allocation5 [shape = 's32[1]{0}', space=sflag, size = 0x4, scoped, tag = 'scoped memory for _forward.1']
    %12 = vsyncpa [#allocation3], 0
    %13 = vsyncpa [#allocation5], 0
    // Predicated region
    $region2: #{_forward.1} parent=1 // pred_check
      _
    $region3: #{_forward.1} parent=1 // pred_check_branch
      %15 = sbr.rel (0) target = $region5
    $region4: #{_forward.1} parent=1 // pred_region
      _
    $region5: #{_forward.1} parent=1 // pred_fallthru
      _
    // Predicated region
    $region6: #{_forward.1} parent=1 // pred_check
      _
    $region7: #{_forward.1} parent=1 // pred_check_branch
      %17 = sbr.rel (0) target = $region9
    $region8: #{_forward.1} parent=1 // pred_region
      _
    $region9: #{_forward.1} parent=1 // pred_fallthru
      _
    // Predicated region
    $region10: #{_forward.1} parent=1 // pred_check
      _
    $region11: #{_forward.1} parent=1 // pred_check_branch
      %19 = sbr.rel (0) target = $region13
    $region12: #{_forward.1} parent=1 // pred_region
      _
    $region13: #{_forward.1} parent=1 // pred_fallthru
      _
    // Predicated region
    $region14: #{_forward.1} parent=1 // pred_check
      _
    $region15: #{_forward.1} parent=1 // pred_check_branch
      %21 = sbr.rel (0) target = $region17
    $region16: #{_forward.1} parent=1 // pred_region
      %s23 = ssub.s32 4096, 4096
      %24 = vsyncadd [#allocation3], %s23
      %s25 = sshll.u32 [#allocation2], 4
      %s26 = int_to_ptr.vmem [resolvable:$true] %s25
      %31 = dma.hbm_to_vmem [thread:$0]  %s3, 4096, %s26, [#allocation3], 128, 128, 8
    $region17: #{_forward.1} parent=1 // pred_fallthru
      _
    // Predicated region
    $region18: #{_forward.1} parent=1 // pred_check
      _
    $region19: #{_forward.1} parent=1 // pred_check_branch
      %33 = sbr.rel (0) target = $region21
    $region20: #{_forward.1} parent=1 // pred_region
      _
    $region21: #{_forward.1} parent=1 // pred_fallthru
      _
    // Predicated region
    $region22: #{_forward.1} parent=1 // pred_check
      _
    $region23: #{_forward.1} parent=1 // pred_check_branch
      %35 = sbr.rel (0) target = $region25
    $region24: #{_forward.1} parent=1 // pred_region
      %s37 = ssub.s32 2048, 2048
      %38 = vsyncadd [#allocation5], %s37
      %s39 = sshll.u32 [#allocation4], 4
      %s40 = int_to_ptr.vmem [resolvable:$true] %s39
      %45 = dma.hbm_to_vmem [thread:$0]  %s5, 2048, %s40, [#allocation5], 128, 128, 8
    $region25: #{_forward.1} parent=1 // pred_fallthru
      _
    // Predicated region
    $region26: #{_forward.1} parent=1 // pred_check
      _
    $region27: #{_forward.1} parent=1 // pred_check_branch
      %47 = sbr.rel (0) target = $region29
    $region28: #{_forward.1} parent=1 // pred_region
      _
    $region29: #{_forward.1} parent=1 // pred_fallthru
      _
    // Predicated region
    $region30: #{_forward.1} parent=1 // pred_check
      _
    $region31: #{_forward.1} parent=1 // pred_check_branch
      %49 = sbr.rel (0) target = $region33
    $region32: #{_forward.1} parent=1 // pred_region
      %50 = dma.done [#allocation3], 4096
    $region33: #{_forward.1} parent=1 // pred_fallthru
      _
    // Predicated region
    $region34: #{_forward.1} parent=1 // pred_check
      _
    $region35: #{_forward.1} parent=1 // pred_check_branch
      %52 = sbr.rel (0) target = $region37
    $region36: #{_forward.1} parent=1 // pred_region
      %53 = dma.done [#allocation5], 2048
    $region37: #{_forward.1} parent=1 // pred_fallthru
      _
    %v54 = vld [vmem:[%s0] sm:$0xff]
    %v55 = vld [vmem:[%s1] sm:$0x3f]
    %v56 = vld [vmem:[%s2] sm:$0x1]
    %v58 = vlaneseq
    %v59 = vshrl.u32 %v58, 7
    %v60 = vsub.s32 0, %v59
    %v61 = vrot.slane %v56, %v60
    %vm63 = vcmask 48128
    %v65 = vsel %vm63, %v54, 0
    %vm67 = vcmask 1045504
    %v69 = vsel %vm67, %v55, 0
    %71 = vmatprep.subr.mxu0 0.0
    %72 = vmatpush1.msra.mxu0 %v69
    %73 = vmatprep.subr.mxu0 0.0
    %74 = vmatpush1.msra.mxu0 0.0
    %75 = vmatprep.subr.mxu0 0.0
    %76 = vmatpush1.msra.mxu0 0.0
    %77 = vmatprep.subr.mxu0 0.0
    %78 = vmatpush1.msra.mxu0 0.0
    %79 = vmatprep.subr.mxu0 0.0
    %80 = vmatpush1.msra.mxu0 0.0
    %81 = vmatprep.subr.mxu0 0.0
    %82 = vmatpush1.msra.mxu0 0.0
    %83 = vmatprep.subr.mxu0 0.0
    %84 = vmatpush1.msra.mxu0 0.0
    %85 = vmatprep.subr.mxu0 0.0
    %86 = vmatpush1.msra.mxu0 0.0
    %87 = vmatprep.subr.mxu0 0.0
    %88 = vmatpush1.msra.mxu0 0.0
    %89 = vmatprep.subr.mxu0 0.0
    %90 = vmatpush1.msra.mxu0 0.0
    %91 = vmatprep.subr.mxu0 0.0
    %92 = vmatpush1.msra.mxu0 0.0
    %93 = vmatprep.subr.mxu0 0.0
    %94 = vmatpush1.msra.mxu0 0.0
    %95 = vmatprep.subr.mxu0 0.0
    %96 = vmatpush1.msra.mxu0 0.0
    %97 = vmatprep.subr.mxu0 0.0
    %98 = vmatpush1.msra.mxu0 0.0
    %99 = vmatprep.subr.mxu0 0.0
    %100 = vmatpush1.msra.mxu0 0.0
    %101 = vmatprep.subr.mxu0 0.0
    %102 = vmatpush1.msra.mxu0 0.0
    %103 = vmatprep.subr.mxu0 0.0
    %104 = vmatpush1.msra.mxu0 0.0
    %105 = vmatprep.subr.mxu0 0.0
    %106 = vmatpush1.msra.mxu0 0.0
    %107 = vmatprep.subr.mxu0 0.0
    %108 = vmatpush1.msra.mxu0 0.0
    %109 = vmatprep.subr.mxu0 0.0
    %110 = vmatpush1.msra.mxu0 0.0
    %111 = vmatprep.subr.mxu0 0.0
    %112 = vmatpush1.msra.mxu0 0.0
    %113 = vmatprep.subr.mxu0 0.0
    %114 = vmatpush1.msra.mxu0 0.0
    %115 = vmatprep.subr.mxu0 0.0
    %116 = vmatpush1.msra.mxu0 0.0
    %117 = vmatprep.subr.mxu0 0.0
    %118 = vmatpush1.msra.mxu0 0.0
    %119 = vmatprep.subr.mxu0 0.0
    %120 = vmatpush1.msra.mxu0 0.0
    %121 = vmatprep.subr.mxu0 0.0
    %122 = vmatpush1.msra.mxu0 0.0
    %123 = vmatprep.subr.mxu0 0.0
    %124 = vmatpush1.msra.mxu0 0.0
    %125 = vmatprep.subr.mxu0 0.0
    %126 = vmatpush1.msra.mxu0 0.0
    %127 = vmatprep.subr.mxu0 0.0
    %128 = vmatpush1.msra.mxu0 0.0
    %129 = vmatprep.subr.mxu0 0.0
    %130 = vmatpush1.msra.mxu0 0.0
    %131 = vmatprep.subr.mxu0 0.0
    %132 = vmatpush1.msra.mxu0 0.0
    %133 = vmatprep.subr.mxu0 0.0
    %134 = vmatpush1.msra.mxu0 0.0
    %135 = vmatprep.mubr.f32.mxu0 0.0
    %136 = vmatmul.mubr.f32.gmra.mrb[0].mxu0 %v65
    %v137 = vpop.f32.mrb[0].mxu0
    %v138 = vadd.f32 %v61, %v137
    %v139 = vpop.f32.mrb[0].mxu0
    %140 = vdwg.mxu0
    %v141 = vtanh.pop %v138
    %v142 = vld [vmem:[#allocation2] sm:$0xff]
    %v143 = vld [vmem:[#allocation2 + $0x8] sm:$0xff]
    %v144 = vld [vmem:[#allocation2 + $0x10] sm:$0xff]
    %v145 = vld [vmem:[#allocation2 + $0x18] sm:$0xff]
    %v146 = vld [vmem:[#allocation2 + $0x20] sm:$0xff]
    %v147 = vld [vmem:[#allocation2 + $0x28] sm:$0xff]
    %v148 = vld [vmem:[#allocation2 + $0x30] sm:$0xff]
    %v149 = vld [vmem:[#allocation2 + $0x38] sm:$0xff]
    %v150 = vld [vmem:[#allocation2 + $0x40] sm:$0xff]
    %v151 = vld [vmem:[#allocation2 + $0x48] sm:$0xff]
    %v152 = vld [vmem:[#allocation2 + $0x50] sm:$0xff]
    %v153 = vld [vmem:[#allocation2 + $0x58] sm:$0xff]
    %v154 = vld [vmem:[#allocation2 + $0x60] sm:$0xff]
    %v155 = vld [vmem:[#allocation2 + $0x68] sm:$0xff]
    %v156 = vld [vmem:[#allocation2 + $0x70] sm:$0xff]
    %v157 = vld [vmem:[#allocation2 + $0x78] sm:$0xff]
    %v158 = vld [vmem:[%s4] sm:$0x1]
    %v160 = vlaneseq
    %v161 = vshrl.u32 %v160, 7
    %v162 = vsub.s32 0, %v161
    %v163 = vrot.slane %v158, %v162
    %165 = vmatprep.subr.mxu0 0.0
    %166 = vmatpush1.msra.mxu0 %v142
    %167 = vmatprep.subr.mxu0 0.0
    %168 = vmatpush1.msra.mxu0 %v143
    %169 = vmatprep.subr.mxu0 0.0
    %170 = vmatpush1.msra.mxu0 %v144
    %171 = vmatprep.subr.mxu0 0.0
    %172 = vmatpush1.msra.mxu0 %v145
    %173 = vmatprep.subr.mxu0 0.0
    %174 = vmatpush1.msra.mxu0 %v146
    %175 = vmatprep.subr.mxu0 0.0
    %176 = vmatpush1.msra.mxu0 %v147
    %177 = vmatprep.subr.mxu0 0.0
    %178 = vmatpush1.msra.mxu0 %v148
    %179 = vmatprep.subr.mxu0 0.0
    %180 = vmatpush1.msra.mxu0 %v149
    %181 = vmatprep.subr.mxu0 0.0
    %182 = vmatpush1.msra.mxu0 %v150
    %183 = vmatprep.subr.mxu0 0.0
    %184 = vmatpush1.msra.mxu0 %v151
    %185 = vmatprep.subr.mxu0 0.0
    %186 = vmatpush1.msra.mxu0 %v152
    %187 = vmatprep.subr.mxu0 0.0
    %188 = vmatpush1.msra.mxu0 %v153
    %189 = vmatprep.subr.mxu0 0.0
    %190 = vmatpush1.msra.mxu0 %v154
    %191 = vmatprep.subr.mxu0 0.0
    %192 = vmatpush1.msra.mxu0 %v155
    %193 = vmatprep.subr.mxu0 0.0
    %194 = vmatpush1.msra.mxu0 %v156
    %195 = vmatprep.subr.mxu0 0.0
    %196 = vmatpush1.msra.mxu0 %v157
    %197 = vmatprep.subr.mxu0 0.0
    %198 = vmatpush1.msra.mxu0 0.0
    %199 = vmatprep.subr.mxu0 0.0
    %200 = vmatpush1.msra.mxu0 0.0
    %201 = vmatprep.subr.mxu0 0.0
    %202 = vmatpush1.msra.mxu0 0.0
    %203 = vmatprep.subr.mxu0 0.0
    %204 = vmatpush1.msra.mxu0 0.0
    %205 = vmatprep.subr.mxu0 0.0
    %206 = vmatpush1.msra.mxu0 0.0
    %207 = vmatprep.subr.mxu0 0.0
    %208 = vmatpush1.msra.mxu0 0.0
    %209 = vmatprep.subr.mxu0 0.0
    %210 = vmatpush1.msra.mxu0 0.0
    %211 = vmatprep.subr.mxu0 0.0
    %212 = vmatpush1.msra.mxu0 0.0
    %213 = vmatprep.subr.mxu0 0.0
    %214 = vmatpush1.msra.mxu0 0.0
    %215 = vmatprep.subr.mxu0 0.0
    %216 = vmatpush1.msra.mxu0 0.0
    %217 = vmatprep.subr.mxu0 0.0
    %218 = vmatpush1.msra.mxu0 0.0
    %219 = vmatprep.subr.mxu0 0.0
    %220 = vmatpush1.msra.mxu0 0.0
    %221 = vmatprep.subr.mxu0 0.0
    %222 = vmatpush1.msra.mxu0 0.0
    %223 = vmatprep.subr.mxu0 0.0
    %224 = vmatpush1.msra.mxu0 0.0
    %225 = vmatprep.subr.mxu0 0.0
    %226 = vmatpush1.msra.mxu0 0.0
    %227 = vmatprep.subr.mxu0 0.0
    %228 = vmatpush1.msra.mxu0 0.0
    %229 = vmatprep.mubr.f32.mxu0 0.0
    %230 = vmatmul.mubr.f32.gmra.mrb[0].mxu0 %v141
    %v231 = vpop.f32.mrb[0].mxu0
    %v232 = vadd.f32 %v163, %v231
    %v233 = vpop.f32.mrb[0].mxu0
    %234 = vdwg.mxu0
    %v235 = vtanh.pop %v232
    %s236 = scalar_lea.vmem [#allocation2], 128
    %v237 = vld [vmem:[%s236] sm:$0xff]
    %v238 = vld [vmem:[%s236 + $0x8] sm:$0xff]
    %v239 = vld [vmem:[%s236 + $0x10] sm:$0xff]
    %v240 = vld [vmem:[%s236 + $0x18] sm:$0xff]
    %v241 = vld [vmem:[%s236 + $0x20] sm:$0xff]
    %v242 = vld [vmem:[%s236 + $0x28] sm:$0xff]
    %v243 = vld [vmem:[%s236 + $0x30] sm:$0xff]
    %v244 = vld [vmem:[%s236 + $0x38] sm:$0xff]
    %v245 = vld [vmem:[%s236 + $0x40] sm:$0xff]
    %v246 = vld [vmem:[%s236 + $0x48] sm:$0xff]
    %v247 = vld [vmem:[%s236 + $0x50] sm:$0xff]
    %v248 = vld [vmem:[%s236 + $0x58] sm:$0xff]
    %v249 = vld [vmem:[%s236 + $0x60] sm:$0xff]
    %v250 = vld [vmem:[%s236 + $0x68] sm:$0xff]
    %v251 = vld [vmem:[%s236 + $0x70] sm:$0xff]
    %v252 = vld [vmem:[%s236 + $0x78] sm:$0xff]
    %s253 = scalar_lea.vmem %s4, 1
    %v254 = vld [vmem:[%s253] sm:$0x1]
    %v256 = vlaneseq
    %v257 = vshrl.u32 %v256, 7
    %v258 = vsub.s32 0, %v257
    %v259 = vrot.slane %v254, %v258
    %261 = vmatprep.subr.mxu0 0.0
    %262 = vmatpush1.msra.mxu0 %v237
    %263 = vmatprep.subr.mxu0 0.0
    %264 = vmatpush1.msra.mxu0 %v238
    %265 = vmatprep.subr.mxu0 0.0
    %266 = vmatpush1.msra.mxu0 %v239
    %267 = vmatprep.subr.mxu0 0.0
    %268 = vmatpush1.msra.mxu0 %v240
    %269 = vmatprep.subr.mxu0 0.0
    %270 = vmatpush1.msra.mxu0 %v241
    %271 = vmatprep.subr.mxu0 0.0
    %272 = vmatpush1.msra.mxu0 %v242
    %273 = vmatprep.subr.mxu0 0.0
    %274 = vmatpush1.msra.mxu0 %v243
    %275 = vmatprep.subr.mxu0 0.0
    %276 = vmatpush1.msra.mxu0 %v244
    %277 = vmatprep.subr.mxu0 0.0
    %278 = vmatpush1.msra.mxu0 %v245
    %279 = vmatprep.subr.mxu0 0.0
    %280 = vmatpush1.msra.mxu0 %v246
    %281 = vmatprep.subr.mxu0 0.0
    %282 = vmatpush1.msra.mxu0 %v247
    %283 = vmatprep.subr.mxu0 0.0
    %284 = vmatpush1.msra.mxu0 %v248
    %285 = vmatprep.subr.mxu0 0.0
    %286 = vmatpush1.msra.mxu0 %v249
    %287 = vmatprep.subr.mxu0 0.0
    %288 = vmatpush1.msra.mxu0 %v250
    %289 = vmatprep.subr.mxu0 0.0
    %290 = vmatpush1.msra.mxu0 %v251
    %291 = vmatprep.subr.mxu0 0.0
    %292 = vmatpush1.msra.mxu0 %v252
    %293 = vmatprep.subr.mxu0 0.0
    %294 = vmatpush1.msra.mxu0 0.0
    %295 = vmatprep.subr.mxu0 0.0
    %296 = vmatpush1.msra.mxu0 0.0
    %297 = vmatprep.subr.mxu0 0.0
    %298 = vmatpush1.msra.mxu0 0.0
    %299 = vmatprep.subr.mxu0 0.0
    %300 = vmatpush1.msra.mxu0 0.0
    %301 = vmatprep.subr.mxu0 0.0
    %302 = vmatpush1.msra.mxu0 0.0
    %303 = vmatprep.subr.mxu0 0.0
    %304 = vmatpush1.msra.mxu0 0.0
    %305 = vmatprep.subr.mxu0 0.0
    %306 = vmatpush1.msra.mxu0 0.0
    %307 = vmatprep.subr.mxu0 0.0
    %308 = vmatpush1.msra.mxu0 0.0
    %309 = vmatprep.subr.mxu0 0.0
    %310 = vmatpush1.msra.mxu0 0.0
    %311 = vmatprep.subr.mxu0 0.0
    %312 = vmatpush1.msra.mxu0 0.0
    %313 = vmatprep.subr.mxu0 0.0
    %314 = vmatpush1.msra.mxu0 0.0
    %315 = vmatprep.subr.mxu0 0.0
    %316 = vmatpush1.msra.mxu0 0.0
    %317 = vmatprep.subr.mxu0 0.0
    %318 = vmatpush1.msra.mxu0 0.0
    %319 = vmatprep.subr.mxu0 0.0
    %320 = vmatpush1.msra.mxu0 0.0
    %321 = vmatprep.subr.mxu0 0.0
    %322 = vmatpush1.msra.mxu0 0.0
    %323 = vmatprep.subr.mxu0 0.0
    %324 = vmatpush1.msra.mxu0 0.0
    %325 = vmatprep.mubr.f32.mxu0 0.0
    %326 = vmatmul.mubr.f32.gmra.mrb[0].mxu0 %v235
    %v327 = vpop.f32.mrb[0].mxu0
    %v328 = vadd.f32 %v259, %v327
    %v329 = vpop.f32.mrb[0].mxu0
    %330 = vdwg.mxu0
    %v331 = vtanh.pop %v328
    %v332 = vld [vmem:[#allocation4] sm:$0xff]
    %v333 = vld [vmem:[#allocation4 + $0x8] sm:$0xff]
    %v334 = vld [vmem:[#allocation4 + $0x10] sm:$0xff]
    %v335 = vld [vmem:[#allocation4 + $0x18] sm:$0xff]
    %v336 = vld [vmem:[#allocation4 + $0x20] sm:$0xff]
    %v337 = vld [vmem:[#allocation4 + $0x28] sm:$0xff]
    %v338 = vld [vmem:[#allocation4 + $0x30] sm:$0xff]
    %v339 = vld [vmem:[#allocation4 + $0x38] sm:$0xff]
    %v340 = vld [vmem:[#allocation4 + $0x40] sm:$0xff]
    %v341 = vld [vmem:[#allocation4 + $0x48] sm:$0xff]
    %v342 = vld [vmem:[#allocation4 + $0x50] sm:$0xff]
    %v343 = vld [vmem:[#allocation4 + $0x58] sm:$0xff]
    %v344 = vld [vmem:[#allocation4 + $0x60] sm:$0xff]
    %v345 = vld [vmem:[#allocation4 + $0x68] sm:$0xff]
    %v346 = vld [vmem:[#allocation4 + $0x70] sm:$0xff]
    %v347 = vld [vmem:[#allocation4 + $0x78] sm:$0xff]
    %v348 = vld [vmem:[%s6] sm:$0x1]
    %v350 = vlaneseq
    %v351 = vshrl.u32 %v350, 7
    %v352 = vsub.s32 0, %v351
    %v353 = vrot.slane %v348, %v352
    %355 = vmatprep.subr.mxu0 0.0
    %356 = vmatpush1.msra.mxu0 %v332
    %357 = vmatprep.subr.mxu0 0.0
    %358 = vmatpush1.msra.mxu0 %v333
    %359 = vmatprep.subr.mxu0 0.0
    %360 = vmatpush1.msra.mxu0 %v334
    %361 = vmatprep.subr.mxu0 0.0
    %362 = vmatpush1.msra.mxu0 %v335
    %363 = vmatprep.subr.mxu0 0.0
    %364 = vmatpush1.msra.mxu0 %v336
    %365 = vmatprep.subr.mxu0 0.0
    %366 = vmatpush1.msra.mxu0 %v337
    %367 = vmatprep.subr.mxu0 0.0
    %368 = vmatpush1.msra.mxu0 %v338
    %369 = vmatprep.subr.mxu0 0.0
    %370 = vmatpush1.msra.mxu0 %v339
    %371 = vmatprep.subr.mxu0 0.0
    %372 = vmatpush1.msra.mxu0 %v340
    %373 = vmatprep.subr.mxu0 0.0
    %374 = vmatpush1.msra.mxu0 %v341
    %375 = vmatprep.subr.mxu0 0.0
    %376 = vmatpush1.msra.mxu0 %v342
    %377 = vmatprep.subr.mxu0 0.0
    %378 = vmatpush1.msra.mxu0 %v343
    %379 = vmatprep.subr.mxu0 0.0
    %380 = vmatpush1.msra.mxu0 %v344
    %381 = vmatprep.subr.mxu0 0.0
    %382 = vmatpush1.msra.mxu0 %v345
    %383 = vmatprep.subr.mxu0 0.0
    %384 = vmatpush1.msra.mxu0 %v346
    %385 = vmatprep.subr.mxu0 0.0
    %386 = vmatpush1.msra.mxu0 %v347
    %387 = vmatprep.subr.mxu0 0.0
    %388 = vmatpush1.msra.mxu0 0.0
    %389 = vmatprep.subr.mxu0 0.0
    %390 = vmatpush1.msra.mxu0 0.0
    %391 = vmatprep.subr.mxu0 0.0
    %392 = vmatpush1.msra.mxu0 0.0
    %393 = vmatprep.subr.mxu0 0.0
    %394 = vmatpush1.msra.mxu0 0.0
    %395 = vmatprep.subr.mxu0 0.0
    %396 = vmatpush1.msra.mxu0 0.0
    %397 = vmatprep.subr.mxu0 0.0
    %398 = vmatpush1.msra.mxu0 0.0
    %399 = vmatprep.subr.mxu0 0.0
    %400 = vmatpush1.msra.mxu0 0.0
    %401 = vmatprep.subr.mxu0 0.0
    %402 = vmatpush1.msra.mxu0 0.0
    %403 = vmatprep.subr.mxu0 0.0
    %404 = vmatpush1.msra.mxu0 0.0
    %405 = vmatprep.subr.mxu0 0.0
    %406 = vmatpush1.msra.mxu0 0.0
    %407 = vmatprep.subr.mxu0 0.0
    %408 = vmatpush1.msra.mxu0 0.0
    %409 = vmatprep.subr.mxu0 0.0
    %410 = vmatpush1.msra.mxu0 0.0
    %411 = vmatprep.subr.mxu0 0.0
    %412 = vmatpush1.msra.mxu0 0.0
    %413 = vmatprep.subr.mxu0 0.0
    %414 = vmatpush1.msra.mxu0 0.0
    %415 = vmatprep.subr.mxu0 0.0
    %416 = vmatpush1.msra.mxu0 0.0
    %417 = vmatprep.subr.mxu0 0.0
    %418 = vmatpush1.msra.mxu0 0.0
    %419 = vmatprep.mubr.f32.mxu0 0.0
    %420 = vmatmul.mubr.f32.gmra.mrb[0].mxu0 %v331
    %v421 = vpop.f32.mrb[0].mxu0
    %v422 = vadd.f32 %v353, %v421
    %v423 = vpop.f32.mrb[0].mxu0
    %424 = vdwg.mxu0
    %vm425 = vcmask 31744
    %426 = vst.msk [vmem:[%s7] sm:$0xff] %vm425, %v422
    // Predicated region
    $region38: #{_forward.1} parent=1 // pred_check
      _
    $region39: #{_forward.1} parent=1 // pred_check_branch
      %428 = sbr.rel (0) target = $region41
    $region40: #{_forward.1} parent=1 // pred_region
      _
    $region41: #{_forward.1} parent=1 // pred_fallthru
      _
    // Predicated region
    $region42: #{_forward.1} parent=1 // pred_check
      _
    $region43: #{_forward.1} parent=1 // pred_check_branch
      %430 = sbr.rel (0) target = $region45
    $region44: #{_forward.1} parent=1 // pred_region
      _
    $region45: #{_forward.1} parent=1 // pred_fallthru
      _
    %431 = vsyncpa [#allocation3], 1
    %432 = vsyncpa [#allocation5], 1

</llo_original>
